<compile_context>
chip_gen: v5e
topology: v5e:2x2
jax: 0.10.0
libtpu: 0.0.40
codegen_flags: <defaults>
</compile_context>

<pallas_src>
import math

import jax
import jax.numpy as jnp
import numpy as np
from jax.experimental import pallas as pl
from jax.experimental.pallas import tpu as pltpu


def _attention_kernel(q_ref, k_ref, v_ref, bias_ref,
                      wq_ref, bq_ref, wk_ref, bk_ref, wv_ref, bv_ref,
                      wo_ref, bo_ref,
                      out_ref, attn_ref):
    rows, D = q_ref.shape            # rows == tb * S (flat batch-tile slab)
    tb, _, S = bias_ref.shape        # bias block is (tb, 1, S)
    f32 = jnp.float32
    bf16 = jnp.bfloat16

    # bf16 operands / f32 accumulation for every MXU matmul.  Inputs arrive
    # already flattened to 2-D (rows, D); weights arrive pre-transposed
    # (in, out) and pre-cast to bf16; biases are added in f32.
    q2 = q_ref[...].astype(bf16)
    k2 = k_ref[...].astype(bf16)
    v2 = v_ref[...].astype(bf16)

    # The 1/sqrt(d_k) softmax scale is already folded into wq/bq on the host.
    qp = jnp.dot(q2, wq_ref[...], preferred_element_type=f32) + bq_ref[...]
    kp = jnp.dot(k2, wk_ref[...], preferred_element_type=f32) + bk_ref[...]
    vp = jnp.dot(v2, wv_ref[...], preferred_element_type=f32) + bv_ref[...]

    # Leading-dim split only (lane dim D untouched) -> cheap layout-wise.
    qp3 = qp.reshape(tb, S, D).astype(bf16)
    kp3 = kp.reshape(tb, S, D).astype(bf16)
    vp3 = vp.reshape(tb, S, D).astype(bf16)

    # Scores (scale pre-applied) + additive mask bias (0 where attended,
    # -1e9 where mask == 0; broadcasts over query rows).
    scores = jnp.einsum("bqd,bkd->bqk", qp3, kp3,
                        preferred_element_type=f32)
    scores = scores + bias_ref[...]

    # Numerically stable softmax over the key axis.  The reciprocal starts on
    # the EUP (free slot) and gets one Newton step so the user-visible attn
    # rows are normalized to ~f32 exactness.
    m = jnp.max(scores, axis=-1, keepdims=True)
    e = jnp.exp(scores - m)
    denom = jnp.sum(e, axis=-1, keepdims=True)
    r = pl.reciprocal(denom, approx=True)
    r = r * (2.0 - denom * r)
    attn = e * r

    # Attention-weighted values, then the output projection on the flat slab.
    attn_b = attn.astype(bf16)
    ctx = jnp.einsum("bqk,bkd->bqd", attn_b, vp3,
                     preferred_element_type=f32)
    out = jnp.dot(ctx.reshape(rows, D).astype(bf16), wo_ref[...],
                  preferred_element_type=f32) + bo_ref[...]

    out_ref[...] = out.astype(out_ref.dtype)
    attn_ref[...] = attn_b.astype(attn_ref.dtype)


def attention_pallas(q, k, v, mask, params):
    """q, k, v: (B, S, D) float32; mask: (B, S) (0 => masked out).

    Returns (output (B,S,D) f32, attention weights (B,S,S) bf16).
    The bf16 attention weights / bf16 MXU operands are an intentional
    precision tradeoff (documented; ~0.4% relative rounding).
    """
    B, S, D = q.shape
    wq, bq, wk, bk, wv, bv, wo, bo = params
    scale = jnp.float32(1.0 / math.sqrt(D))
    bf16 = jnp.bfloat16

    # Host-side weight prep: pre-transpose to (in, out), fold the softmax
    # scale into the q projection, cast matmul operands to bf16.
    wq_t = (wq * scale).T.astype(bf16)
    bq_2 = (bq * scale).reshape(1, D).astype(jnp.float32)
    wk_t = wk.T.astype(bf16)
    bk_2 = bk.reshape(1, D).astype(jnp.float32)
    wv_t = wv.T.astype(bf16)
    bv_2 = bv.reshape(1, D).astype(jnp.float32)
    wo_t = wo.T.astype(bf16)
    bo_2 = bo.reshape(1, D).astype(jnp.float32)

    # Additive mask bias exactly matching masked_fill(mask == 0, -1e9):
    # 0 where attended, -1e9 where mask == 0 (correct for non-binary masks).
    bias = jnp.where(mask == 0, jnp.float32(-1.0e9),
                     jnp.float32(0.0)).reshape(B, 1, S)

    # Flatten batch/seq on the host (free) so the kernel's projections and
    # the `out` store operate on 2-D (tb*S, D) slabs with no in-kernel Ref
    # reshape / relayout.
    q2 = q.reshape(B * S, D)
    k2 = k.reshape(B * S, D)
    v2 = v.reshape(B * S, D)

    # Pack several batch elements per grid step when per-batch tiles are
    # small (amortizes the ~0.35us grid-step overhead, fills MXU sublanes),
    # but keep at least 2 grid steps so both v7x TensorCores get work.
    tb = 1
    if B >= 2:
        for cand in range(min(B // 2, 8), 0, -1):
            if B % cand == 0 and cand * S <= 1024 and (cand * S) % 8 == 0:
                tb = cand
                break
    rows = tb * S
    # TODO(synk): for large S (>= ~512 on v7x, ~1024-1536 on v5e/v6e) replace
    # the monolithic (S,S) block with a q/kv-tiled flash-style online-softmax
    # loop (VMEM-scratch accumulators, kv axis "arbitrary") to bound VMEM.
    # TODO(synk): at large D, mark the weight/bias BlockSpecs single-buffered
    # (pipeline_mode=pl.Buffered(1)) since their block index is grid-constant.
    # TODO(synk): for tiny D (<<128), a fused block-diagonal [q|k|v] x
    # blockdiag(Wq,Wk,Wv) projection would cut 3 MXU push/pop sequences to 1.

    # VMEM limit: ~75% of the chip's capacity, capped at 64 MiB (v7x only has
    # 64 MiB total per TensorCore, so never request all of it).
    try:
        vmem_cap = pltpu.get_tpu_info().vmem_capacity_bytes
    except Exception:
        vmem_cap = 128 << 20
    vmem_limit = min(64 << 20, int(vmem_cap) * 3 // 4)

    qkv_spec = pl.BlockSpec((rows, D), lambda b: (b, 0))
    bias_spec = pl.BlockSpec((tb, 1, S), lambda b: (b, 0, 0))
    w_spec = pl.BlockSpec((D, D), lambda b: (0, 0))
    b_spec = pl.BlockSpec((1, D), lambda b: (0, 0))

    out, attn = pl.pallas_call(
        _attention_kernel,
        out_shape=(
            jax.ShapeDtypeStruct((B * S, D), jnp.float32),
            jax.ShapeDtypeStruct((B, S, S), jnp.bfloat16),
        ),
        grid=(B // tb,),
        in_specs=[
            qkv_spec, qkv_spec, qkv_spec, bias_spec,
            w_spec, b_spec,   # q_linear (scale folded in)
            w_spec, b_spec,   # k_linear
            w_spec, b_spec,   # v_linear
            w_spec, b_spec,   # out
        ],
        out_specs=(
            pl.BlockSpec((rows, D), lambda b: (b, 0)),
            pl.BlockSpec((tb, S, S), lambda b: (b, 0, 0)),
        ),
        compiler_params=pltpu.CompilerParams(
            dimension_semantics=("parallel",),
            vmem_limit_bytes=vmem_limit),
    )(q2, k2, v2, bias, wq_t, bq_2, wk_t, bk_2, wv_t, bv_2, wo_t, bo_2)

    return out.reshape(B, S, D), attn


def attention_reference(q, k, v, mask, params):
    """Pure-JAX reference mirroring the PyTorch forward exactly (f32)."""
    wq, bq, wk, bk, wv, bv, wo, bo = params
    D = q.shape[-1]
    kp = k @ wk.T + bk
    qp = q @ wq.T + bq
    vp = v @ wv.T + bv
    weights = jnp.einsum("bqd,bkd->bqk", qp, kp) / math.sqrt(D)
    weights = jnp.where(mask[:, None, :] == 0, -1.0e9, weights)
    attn = jax.nn.softmax(weights, axis=-1)
    out = jnp.einsum("bqk,bkd->bqd", attn, vp)
    out = out @ wo.T + bo
    return out, attn


def init_params(key, d_model):
    """Deterministic PyTorch-Linear-style init: W, b ~ U(-1/sqrt(d), 1/sqrt(d))."""
    bound = 1.0 / math.sqrt(d_model)
    keys = jax.random.split(key, 8)
    params = []
    for i in range(4):  # q, k, v, out
        w = jax.random.uniform(keys[2 * i], (d_model, d_model),
                               minval=-bound, maxval=bound, dtype=jnp.float32)
        b = jax.random.uniform(keys[2 * i + 1], (d_model,),
                               minval=-bound, maxval=bound, dtype=jnp.float32)
        params += [w, b]
    return tuple(params)


if __name__ == "__main__":
    B, S, D = 2, 8, 32  # small shapes consistent with (batch, seq, d_model)

    key = jax.random.PRNGKey(0)
    kq, kk, kv, kp = jax.random.split(key, 4)
    q = jax.random.normal(kq, (B, S, D), dtype=jnp.float32)
    k = jax.random.normal(kk, (B, S, D), dtype=jnp.float32)
    v = jax.random.normal(kv, (B, S, D), dtype=jnp.float32)

    # Padding mask: batch 0 attends to all 8 tokens, batch 1 to the first 5.
    mask = jnp.array([[1] * S, [1] * 5 + [0] * (S - 5)], dtype=jnp.float32)

    params = init_params(kp, D)

    out, attn = attention_pallas(q, k, v, mask, params)
    out = jax.block_until_ready(out)
    attn = jax.block_until_ready(attn)

    out_ref, attn_ref = attention_reference(q, k, v, mask, params)
    # Tolerances relaxed vs. pure-f32: all matmuls use bf16 MXU operands and
    # the attention weights are stored/returned in bf16.
    np.testing.assert_allclose(np.asarray(out), np.asarray(out_ref),
                               rtol=2e-2, atol=2e-2)
    np.testing.assert_allclose(np.asarray(attn, dtype=np.float32),
                               np.asarray(attn_ref),
                               rtol=2e-2, atol=2e-2)

    print("KERNEL_OK")
</pallas_src>

<mosaic_0001>
module attributes {stable_mosaic.version = 11 : i64} {
  func.func @_attention_kernel(%arg0: i32, %arg1: memref<8x32xf32, #tpu.memory_space<vmem>>, %arg2: memref<8x32xf32, #tpu.memory_space<vmem>>, %arg3: memref<8x32xf32, #tpu.memory_space<vmem>>, %arg4: memref<1x1x8xf32, #tpu.memory_space<vmem>>, %arg5: memref<32x32xbf16, #tpu.memory_space<vmem>>, %arg6: memref<1x32xf32, #tpu.memory_space<vmem>>, %arg7: memref<32x32xbf16, #tpu.memory_space<vmem>>, %arg8: memref<1x32xf32, #tpu.memory_space<vmem>>, %arg9: memref<32x32xbf16, #tpu.memory_space<vmem>>, %arg10: memref<1x32xf32, #tpu.memory_space<vmem>>, %arg11: memref<32x32xbf16, #tpu.memory_space<vmem>>, %arg12: memref<1x32xf32, #tpu.memory_space<vmem>>, %arg13: memref<8x32xf32, #tpu.memory_space<vmem>>, %arg14: memref<1x8x8xbf16, #tpu.memory_space<vmem>>) attributes {dimension_semantics = [#tpu.dimension_semantics<parallel>], iteration_bounds = array<i64: 2>, scalar_prefetch = 0 : i64, scratch_operands = 0 : i64, tpu.core_type = #tpu.core_type<tc>, window_params = [{transform_indices = @transform_0, window_bounds = array<i64: 8, 32>}, {transform_indices = @transform_1, window_bounds = array<i64: 8, 32>}, {transform_indices = @transform_2, window_bounds = array<i64: 8, 32>}, {transform_indices = @transform_3, window_bounds = array<i64: 1, 1, 8>}, {pipeline_mode = #tpu.pipeline_mode<synchronous>, transform_indices = @transform_4, window_bounds = array<i64: 32, 32>}, {pipeline_mode = #tpu.pipeline_mode<synchronous>, transform_indices = @transform_5, window_bounds = array<i64: 1, 32>}, {pipeline_mode = #tpu.pipeline_mode<synchronous>, transform_indices = @transform_6, window_bounds = array<i64: 32, 32>}, {pipeline_mode = #tpu.pipeline_mode<synchronous>, transform_indices = @transform_7, window_bounds = array<i64: 1, 32>}, {pipeline_mode = #tpu.pipeline_mode<synchronous>, transform_indices = @transform_8, window_bounds = array<i64: 32, 32>}, {pipeline_mode = #tpu.pipeline_mode<synchronous>, transform_indices = @transform_9, window_bounds = array<i64: 1, 32>}, {pipeline_mode = #tpu.pipeline_mode<synchronous>, transform_indices = @transform_10, window_bounds = array<i64: 32, 32>}, {pipeline_mode = #tpu.pipeline_mode<synchronous>, transform_indices = @transform_11, window_bounds = array<i64: 1, 32>}, {transform_indices = @transform_12, window_bounds = array<i64: 8, 32>}, {transform_indices = @transform_13, window_bounds = array<i64: 1, 8, 8>}]} {
    %c0 = arith.constant 0 : index
    %c0_0 = arith.constant 0 : index
    %0 = vector.load %arg1[%c0, %c0_0] : memref<8x32xf32, #tpu.memory_space<vmem>>, vector<8x32xf32>
    %1 = arith.truncf %0 : vector<8x32xf32> to vector<8x32xbf16>
    %c0_1 = arith.constant 0 : index
    %c0_2 = arith.constant 0 : index
    %2 = vector.load %arg2[%c0_1, %c0_2] : memref<8x32xf32, #tpu.memory_space<vmem>>, vector<8x32xf32>
    %3 = arith.truncf %2 : vector<8x32xf32> to vector<8x32xbf16>
    %c0_3 = arith.constant 0 : index
    %c0_4 = arith.constant 0 : index
    %4 = vector.load %arg3[%c0_3, %c0_4] : memref<8x32xf32, #tpu.memory_space<vmem>>, vector<8x32xf32>
    %5 = arith.truncf %4 : vector<8x32xf32> to vector<8x32xbf16>
    %c0_5 = arith.constant 0 : index
    %c0_6 = arith.constant 0 : index
    %6 = vector.load %arg5[%c0_5, %c0_6] : memref<32x32xbf16, #tpu.memory_space<vmem>>, vector<32x32xbf16>
    %cst = arith.constant dense<0.000000e+00> : vector<8x32xf32>
    %7 = tpu.matmul %1, %6, %cst {dimension_numbers = #tpu.dot_dimension_numbers<[1], [0], [0], [1], [0, 0, 1, 1], [], []>} : vector<8x32xbf16>, vector<32x32xbf16>, vector<8x32xf32> -> vector<8x32xf32>
    %c0_7 = arith.constant 0 : index
    %c0_8 = arith.constant 0 : index
    %8 = vector.load %arg6[%c0_7, %c0_8] : memref<1x32xf32, #tpu.memory_space<vmem>>, vector<1x32xf32>
    %9 = vector.broadcast %8 : vector<1x32xf32> to vector<8x32xf32>
    %10 = arith.addf %7, %9 : vector<8x32xf32>
    %c0_9 = arith.constant 0 : index
    %c0_10 = arith.constant 0 : index
    %11 = vector.load %arg7[%c0_9, %c0_10] : memref<32x32xbf16, #tpu.memory_space<vmem>>, vector<32x32xbf16>
    %cst_11 = arith.constant dense<0.000000e+00> : vector<8x32xf32>
    %12 = tpu.matmul %3, %11, %cst_11 {dimension_numbers = #tpu.dot_dimension_numbers<[1], [0], [0], [1], [0, 0, 1, 1], [], []>} : vector<8x32xbf16>, vector<32x32xbf16>, vector<8x32xf32> -> vector<8x32xf32>
    %c0_12 = arith.constant 0 : index
    %c0_13 = arith.constant 0 : index
    %13 = vector.load %arg8[%c0_12, %c0_13] : memref<1x32xf32, #tpu.memory_space<vmem>>, vector<1x32xf32>
    %14 = vector.broadcast %13 : vector<1x32xf32> to vector<8x32xf32>
    %15 = arith.addf %12, %14 : vector<8x32xf32>
    %c0_14 = arith.constant 0 : index
    %c0_15 = arith.constant 0 : index
    %16 = vector.load %arg9[%c0_14, %c0_15] : memref<32x32xbf16, #tpu.memory_space<vmem>>, vector<32x32xbf16>
    %cst_16 = arith.constant dense<0.000000e+00> : vector<8x32xf32>
    %17 = tpu.matmul %5, %16, %cst_16 {dimension_numbers = #tpu.dot_dimension_numbers<[1], [0], [0], [1], [0, 0, 1, 1], [], []>} : vector<8x32xbf16>, vector<32x32xbf16>, vector<8x32xf32> -> vector<8x32xf32>
    %c0_17 = arith.constant 0 : index
    %c0_18 = arith.constant 0 : index
    %18 = vector.load %arg10[%c0_17, %c0_18] : memref<1x32xf32, #tpu.memory_space<vmem>>, vector<1x32xf32>
    %19 = vector.broadcast %18 : vector<1x32xf32> to vector<8x32xf32>
    %20 = arith.addf %17, %19 : vector<8x32xf32>
    %21 = vector.shape_cast %10 : vector<8x32xf32> to vector<1x8x32xf32>
    %22 = arith.truncf %21 : vector<1x8x32xf32> to vector<1x8x32xbf16>
    %23 = vector.shape_cast %15 : vector<8x32xf32> to vector<1x8x32xf32>
    %24 = arith.truncf %23 : vector<1x8x32xf32> to vector<1x8x32xbf16>
    %25 = vector.shape_cast %20 : vector<8x32xf32> to vector<1x8x32xf32>
    %26 = arith.truncf %25 : vector<1x8x32xf32> to vector<1x8x32xbf16>
    "tpu.trace_start"() <{level = 10 : i32, message = "bqd,bkd->bqk"}> : () -> ()
    %cst_19 = arith.constant dense<0.000000e+00> : vector<1x8x8xf32>
    %27 = tpu.matmul %22, %24, %cst_19 {dimension_numbers = #tpu.dot_dimension_numbers<[2], [2], [1], [1], [0, 0, 0, 1, 1, 1], [0], [0]>} : vector<1x8x32xbf16>, vector<1x8x32xbf16>, vector<1x8x8xf32> -> vector<1x8x8xf32>
    "tpu.trace_stop"() : () -> ()
    %c0_20 = arith.constant 0 : index
    %c0_21 = arith.constant 0 : index
    %c0_22 = arith.constant 0 : index
    %28 = vector.load %arg4[%c0_20, %c0_21, %c0_22] : memref<1x1x8xf32, #tpu.memory_space<vmem>>, vector<1x1x8xf32>
    %29 = vector.broadcast %28 : vector<1x1x8xf32> to vector<1x8x8xf32>
    %30 = arith.addf %27, %29 : vector<1x8x8xf32>
    %cst_23 = arith.constant dense<0xFF800000> : vector<1x8xf32>
    %31 = vector.multi_reduction <maximumf>, %30, %cst_23 [2] : vector<1x8x8xf32> to vector<1x8xf32>
    %32 = vector.shape_cast %31 : vector<1x8xf32> to vector<1x8x1xf32>
    %33 = vector.broadcast %32 : vector<1x8x1xf32> to vector<1x8x8xf32>
    %34 = arith.subf %30, %33 : vector<1x8x8xf32>
    %35 = math.exp %34 : vector<1x8x8xf32>
    %cst_24 = arith.constant dense<0.000000e+00> : vector<1x8xf32>
    %36 = vector.multi_reduction <add>, %35, %cst_24 [2] : vector<1x8x8xf32> to vector<1x8xf32>
    %37 = vector.shape_cast %36 : vector<1x8xf32> to vector<1x8x1xf32>
    %38 = tpu.reciprocal %37 {approx = true} : vector<1x8x1xf32> -> vector<1x8x1xf32>
    %39 = arith.mulf %37, %38 : vector<1x8x1xf32>
    %cst_25 = arith.constant 2.000000e+00 : f32
    %40 = vector.broadcast %cst_25 : f32 to vector<1x8x1xf32>
    %41 = arith.subf %40, %39 : vector<1x8x1xf32>
    %42 = arith.mulf %38, %41 : vector<1x8x1xf32>
    %43 = vector.broadcast %42 : vector<1x8x1xf32> to vector<1x8x8xf32>
    %44 = arith.mulf %35, %43 : vector<1x8x8xf32>
    %45 = arith.truncf %44 : vector<1x8x8xf32> to vector<1x8x8xbf16>
    "tpu.trace_start"() <{level = 10 : i32, message = "bqk,bkd->bqd"}> : () -> ()
    %cst_26 = arith.constant dense<0.000000e+00> : vector<1x8x32xf32>
    %46 = tpu.matmul %45, %26, %cst_26 {dimension_numbers = #tpu.dot_dimension_numbers<[2], [1], [1], [2], [0, 0, 0, 1, 1, 2], [0], [0]>} : vector<1x8x8xbf16>, vector<1x8x32xbf16>, vector<1x8x32xf32> -> vector<1x8x32xf32>
    "tpu.trace_stop"() : () -> ()
    %47 = vector.shape_cast %46 : vector<1x8x32xf32> to vector<8x32xf32>
    %48 = arith.truncf %47 : vector<8x32xf32> to vector<8x32xbf16>
    %c0_27 = arith.constant 0 : index
    %c0_28 = arith.constant 0 : index
    %49 = vector.load %arg11[%c0_27, %c0_28] : memref<32x32xbf16, #tpu.memory_space<vmem>>, vector<32x32xbf16>
    %cst_29 = arith.constant dense<0.000000e+00> : vector<8x32xf32>
    %50 = tpu.matmul %48, %49, %cst_29 {dimension_numbers = #tpu.dot_dimension_numbers<[1], [0], [0], [1], [0, 0, 1, 1], [], []>} : vector<8x32xbf16>, vector<32x32xbf16>, vector<8x32xf32> -> vector<8x32xf32>
    %c0_30 = arith.constant 0 : index
    %c0_31 = arith.constant 0 : index
    %51 = vector.load %arg12[%c0_30, %c0_31] : memref<1x32xf32, #tpu.memory_space<vmem>>, vector<1x32xf32>
    %52 = vector.broadcast %51 : vector<1x32xf32> to vector<8x32xf32>
    %53 = arith.addf %50, %52 : vector<8x32xf32>
    %c0_32 = arith.constant 0 : index
    %c0_33 = arith.constant 0 : index
    %54 = vector.load %arg13[%c0_32, %c0_33] : memref<8x32xf32, #tpu.memory_space<vmem>>, vector<8x32xf32>
    tpu.vector_store %arg13[%c0_32, %c0_33], %53 {strides = array<i32>} : memref<8x32xf32, #tpu.memory_space<vmem>>, vector<8x32xf32>,
    %c0_34 = arith.constant 0 : index
    %c0_35 = arith.constant 0 : index
    %c0_36 = arith.constant 0 : index
    %55 = vector.load %arg14[%c0_34, %c0_35, %c0_36] : memref<1x8x8xbf16, #tpu.memory_space<vmem>>, vector<1x8x8xbf16>
    tpu.vector_store %arg14[%c0_34, %c0_35, %c0_36], %45 {strides = array<i32>} : memref<1x8x8xbf16, #tpu.memory_space<vmem>>, vector<1x8x8xbf16>,
    return
  }
  func.func @transform_0(%arg0: i32) -> (i32, i32) {
    %c0_i32 = arith.constant 0 : i32
    %c0_i32_0 = arith.constant 0 : i32
    return %arg0, %c0_i32 : i32, i32
  }
  func.func @transform_1(%arg0: i32) -> (i32, i32) {
    %c0_i32 = arith.constant 0 : i32
    %c0_i32_0 = arith.constant 0 : i32
    return %arg0, %c0_i32 : i32, i32
  }
  func.func @transform_2(%arg0: i32) -> (i32, i32) {
    %c0_i32 = arith.constant 0 : i32
    %c0_i32_0 = arith.constant 0 : i32
    return %arg0, %c0_i32 : i32, i32
  }
  func.func @transform_3(%arg0: i32) -> (i32, i32, i32) {
    %c0_i32 = arith.constant 0 : i32
    %c0_i32_0 = arith.constant 0 : i32
    %c0_i32_1 = arith.constant 0 : i32
    return %arg0, %c0_i32, %c0_i32_0 : i32, i32, i32
  }
  func.func @transform_4(%arg0: i32) -> (i32, i32) {
    %c0_i32 = arith.constant 0 : i32
    %c0_i32_0 = arith.constant 0 : i32
    %c0_i32_1 = arith.constant 0 : i32
    return %c0_i32, %c0_i32_0 : i32, i32
  }
  func.func @transform_5(%arg0: i32) -> (i32, i32) {
    %c0_i32 = arith.constant 0 : i32
    %c0_i32_0 = arith.constant 0 : i32
    %c0_i32_1 = arith.constant 0 : i32
    return %c0_i32, %c0_i32_0 : i32, i32
  }
  func.func @transform_6(%arg0: i32) -> (i32, i32) {
    %c0_i32 = arith.constant 0 : i32
    %c0_i32_0 = arith.constant 0 : i32
    %c0_i32_1 = arith.constant 0 : i32
    return %c0_i32, %c0_i32_0 : i32, i32
  }
  func.func @transform_7(%arg0: i32) -> (i32, i32) {
    %c0_i32 = arith.constant 0 : i32
    %c0_i32_0 = arith.constant 0 : i32
    %c0_i32_1 = arith.constant 0 : i32
    return %c0_i32, %c0_i32_0 : i32, i32
  }
  func.func @transform_8(%arg0: i32) -> (i32, i32) {
    %c0_i32 = arith.constant 0 : i32
    %c0_i32_0 = arith.constant 0 : i32
    %c0_i32_1 = arith.constant 0 : i32
    return %c0_i32, %c0_i32_0 : i32, i32
  }
  func.func @transform_9(%arg0: i32) -> (i32, i32) {
    %c0_i32 = arith.constant 0 : i32
    %c0_i32_0 = arith.constant 0 : i32
    %c0_i32_1 = arith.constant 0 : i32
    return %c0_i32, %c0_i32_0 : i32, i32
  }
  func.func @transform_10(%arg0: i32) -> (i32, i32) {
    %c0_i32 = arith.constant 0 : i32
    %c0_i32_0 = arith.constant 0 : i32
    %c0_i32_1 = arith.constant 0 : i32
    return %c0_i32, %c0_i32_0 : i32, i32
  }
  func.func @transform_11(%arg0: i32) -> (i32, i32) {
    %c0_i32 = arith.constant 0 : i32
    %c0_i32_0 = arith.constant 0 : i32
    %c0_i32_1 = arith.constant 0 : i32
    return %c0_i32, %c0_i32_0 : i32, i32
  }
  func.func @transform_12(%arg0: i32) -> (i32, i32) {
    %c0_i32 = arith.constant 0 : i32
    %c0_i32_0 = arith.constant 0 : i32
    return %arg0, %c0_i32 : i32, i32
  }
  func.func @transform_13(%arg0: i32) -> (i32, i32, i32) {
    %c0_i32 = arith.constant 0 : i32
    %c0_i32_0 = arith.constant 0 : i32
    %c0_i32_1 = arith.constant 0 : i32
    return %arg0, %c0_i32, %c0_i32_0 : i32, i32, i32
  }
}

</mosaic_0001>

<llo_original>
// kernel: tpu_custom_call.1
$region0: #{tpu_custom_call.1}
  #allocation0 [shape = 'u32[]', space=smem, size = 0x4, offset = 0x4, fixed_abs, tag = 'smem constant byte address 0x4 - core index']
  #allocation1 [shape = 'u32[72,128]{1,0:T(1,128)}', space=vmem, size = 0x9000, scoped, tag = 'internal scratch']
  %s0 = inlined_call_operand.hbm [shape: f32[16,32], index: 0, kind: input, shape index: {}]
  %s1 = inlined_call_operand.hbm [shape: f32[16,32], index: 1, kind: input, shape index: {}]
  %s2 = inlined_call_operand.hbm [shape: f32[16,32], index: 2, kind: input, shape index: {}]
  %s3 = inlined_call_operand.vmem [shape: f32[2,1,8], index: 3, kind: input, shape index: {}]
  %s4 = inlined_call_operand.hbm [shape: bf16[32,32], index: 4, kind: input, shape index: {}]
  %s5 = inlined_call_operand.vmem [shape: f32[1,32], index: 5, kind: input, shape index: {}]
  %s6 = inlined_call_operand.hbm [shape: bf16[32,32], index: 6, kind: input, shape index: {}]
  %s7 = inlined_call_operand.vmem [shape: f32[1,32], index: 7, kind: input, shape index: {}]
  %s8 = inlined_call_operand.hbm [shape: bf16[32,32], index: 8, kind: input, shape index: {}]
  %s9 = inlined_call_operand.vmem [shape: f32[1,32], index: 9, kind: input, shape index: {}]
  %s10 = inlined_call_operand.hbm [shape: bf16[32,32], index: 10, kind: input, shape index: {}]
  %s11 = inlined_call_operand.vmem [shape: f32[1,32], index: 11, kind: input, shape index: {}]
  %s12 = inlined_call_operand.hbm [shape: f32[16,32], index: 12, kind: output, shape index: {0}]
  %s13 = inlined_call_operand.hbm [shape: bf16[2,8,8], index: 13, kind: output, shape index: {1}]
  %14 = xla_tuple %s12, %s13
  %s15 = sld [smem:[#allocation0]]
  $region117: #{tpu_custom_call.1} parent=0
    _
  %s17 = ssub.s32 1, %s15
  %s18 = scalar_select 0, %s17, %s15
  $region1: #{tpu_custom_call.1} parent=0
    #allocation2 [shape = 'u8[8192]{0}', space=vmem, size = 0x2000, scoped, tag = 'input window, operand 0']
    #allocation3 [shape = 's32[2]{0}', space=sflag, size = 0x8, scoped, tag = 'scoped memory for tpu_custom_call.1']
    #allocation4 [shape = 's32[2]{0}', space=sflag, size = 0x8, scoped, tag = 'scoped memory for tpu_custom_call.1']
    #allocation5 [shape = 'u8[8192]{0}', space=vmem, size = 0x2000, scoped, tag = 'input window, operand 1']
    #allocation6 [shape = 's32[2]{0}', space=sflag, size = 0x8, scoped, tag = 'scoped memory for tpu_custom_call.1']
    #allocation7 [shape = 'u8[8192]{0}', space=vmem, size = 0x2000, scoped, tag = 'input window, operand 2']
    #allocation8 [shape = 'u8[8192]{0}', space=vmem, size = 0x2000, scoped, tag = 'input window, operand 4, single buffered']
    #allocation9 [shape = 's32[1]{0}', space=sflag, size = 0x4, scoped, tag = 'scoped memory for tpu_custom_call.1']
    #allocation10 [shape = 'u8[8192]{0}', space=vmem, size = 0x2000, scoped, tag = 'input window, operand 6, single buffered']
    #allocation11 [shape = 'u8[8192]{0}', space=vmem, size = 0x2000, scoped, tag = 'input window, operand 8, single buffered']
    #allocation12 [shape = 's32[1]{0}', space=sflag, size = 0x4, scoped, tag = 'scoped memory for tpu_custom_call.1']
    #allocation13 [shape = 'u8[8192]{0}', space=vmem, size = 0x2000, scoped, tag = 'input window, operand 10, single buffered']
    #allocation14 [shape = 'u8[8192]{0}', space=vmem, size = 0x2000, scoped, tag = 'output window, operand 0']
    #allocation15 [shape = 'u8[4096]{0}', space=vmem, size = 0x1000, scoped, tag = 'output window, operand 1']
    #allocation16 [shape = 's32[2]{0}', space=sflag, size = 0x8, scoped, tag = 'scoped memory for tpu_custom_call.1']
    %19 = vsyncpa [#allocation3], 0
    %s20 = scalar_lea.sflag [#allocation3], 1
    %21 = vsyncpa %s20, 0
    %22 = vsyncpa [#allocation6], 0
    %s23 = scalar_lea.sflag [#allocation6], 1
    %24 = vsyncpa %s23, 0
    %25 = vsyncpa [#allocation9], 0
    %26 = vsyncpa [#allocation12], 0
    %27 = vsyncpa [#allocation4], 0
    %s28 = scalar_lea.sflag [#allocation4], 1
    %29 = vsyncpa %s28, 0
    %30 = vsyncpa [#allocation16], 0
    %s31 = scalar_lea.sflag [#allocation16], 1
    %32 = vsyncpa %s31, 0
    loop: start=0, step=1, limit=4
    $region2: #{tpu_custom_call.1} parent=1 // loop_pre_header
      _
    $region3: #{tpu_custom_call.1} parent=1 // loop_header
      %s34 = sphi 0, %s38
      %p35 = scmp.ge.s32.totalorder %s34, 4
      %s44 = sphi 0, %s46
      %s47 = sphi 0, %s44
      %s48 = sphi 0, %s47
      %s64 = sphi 0, %s48
      %s70 = sphi 0, %s72
      %s73 = sphi 0, %s70
      %s74 = sphi 0, %s73
      %s90 = sphi 0, %s74
      %s96 = sphi 0, %s98
      %s99 = sphi 0, %s96
      %s100 = sphi 0, %s99
      %s116 = sphi 0, %s100
      %s122 = sphi 0, %s124
      %s125 = sphi 0, %s122
      %s126 = sphi 0, %s125
      %s142 = sphi 0, %s126
      %s146 = sphi 0, %s146
      %s148 = sphi 0, %s146
      %s149 = sphi 0, %s148
      %s163 = sphi 0, %s149
      %s167 = sphi 0, %s167
      %s169 = sphi 0, %s167
      %s170 = sphi 0, %s169
      %s184 = sphi 0, %s170
      %s188 = sphi 0, %s188
      %s190 = sphi 0, %s188
      %s191 = sphi 0, %s190
      %s205 = sphi 0, %s191
      %s209 = sphi 0, %s209
      %s211 = sphi 0, %s209
      %s212 = sphi 0, %s211
      %s226 = sphi 0, %s212
      %s230 = sphi 0, %s230
      %s232 = sphi 0, %s230
      %s233 = sphi 0, %s232
      %s247 = sphi 0, %s233
      %s251 = sphi 0, %s251
      %s253 = sphi 0, %s251
      %s254 = sphi 0, %s253
      %s268 = sphi 0, %s254
      %s272 = sphi 0, %s272
      %s274 = sphi 0, %s272
      %s275 = sphi 0, %s274
      %s289 = sphi 0, %s275
      %s293 = sphi 0, %s293
      %s295 = sphi 0, %s293
      %s296 = sphi 0, %s295
      %s310 = sphi 0, %s296
      %s316 = sphi 0, %s318
      %s319 = sphi 0, %s316
      %s320 = sphi 0, %s319
      %s336 = sphi 0, %s320
      %s342 = sphi 0, %s344
      %s345 = sphi 0, %s342
      %s346 = sphi 0, %s345
      %s362 = sphi 0, %s346
    $region4: #{tpu_custom_call.1} parent=1 // loop_header_branch
      %37 = sbr.rel (%p35) target = $region8
    $region5: #{tpu_custom_call.1} parent=1 // loop_body
      %s39 = ssub.s32 %s34, 1
      %s40 = ssub.s32 %s34, 2
      %s41 = sadd.s32 %s34, 1
      %s42 = ssub.s32 %s34, %s41
      %p43 = scmp.eq.s32.totalorder %s42, 0
      %s45 = sadd.s32 %s44, 1
      %s46 = scalar_select %p43, %s44, %s45
      %p49 = pneg %p43
      %p50 = scmp.eq.s32.totalorder %s34, 1
      %p51 = por %p49, %p50
      %p52 = scmp.ne.s32.totalorder %s44, %s47
      %p53 = scmp.eq.s32.totalorder %s34, 0
      %p54 = por %p52, %p53
      %p55 = scmp.ne.s32.totalorder %s44, %s47
      %p56 = scmp.eq.s32.totalorder %s39, 1
      %p57 = por %p55, %p56
      %p58 = scmp.ne.s32.totalorder %s47, %s48
      %p59 = scmp.eq.s32.totalorder %s39, 0
      %p60 = por %p58, %p59
      %p61 = scmp.ne.s32.totalorder %s47, %s48
      %p62 = scmp.eq.s32.totalorder %s40, 1
      %p63 = por %p61, %p62
      %p65 = scmp.ne.s32.totalorder %s48, %s64
      %p66 = scmp.eq.s32.totalorder %s40, 0
      %p67 = por %p65, %p66
      %s68 = ssub.s32 %s34, %s41
      %p69 = scmp.eq.s32.totalorder %s68, 0
      %s71 = sadd.s32 %s70, 1
      %s72 = scalar_select %p69, %s70, %s71
      %p75 = pneg %p69
      %p76 = scmp.eq.s32.totalorder %s34, 1
      %p77 = por %p75, %p76
      %p78 = scmp.ne.s32.totalorder %s70, %s73
      %p79 = scmp.eq.s32.totalorder %s34, 0
      %p80 = por %p78, %p79
      %p81 = scmp.ne.s32.totalorder %s70, %s73
      %p82 = scmp.eq.s32.totalorder %s39, 1
      %p83 = por %p81, %p82
      %p84 = scmp.ne.s32.totalorder %s73, %s74
      %p85 = scmp.eq.s32.totalorder %s39, 0
      %p86 = por %p84, %p85
      %p87 = scmp.ne.s32.totalorder %s73, %s74
      %p88 = scmp.eq.s32.totalorder %s40, 1
      %p89 = por %p87, %p88
      %p91 = scmp.ne.s32.totalorder %s74, %s90
      %p92 = scmp.eq.s32.totalorder %s40, 0
      %p93 = por %p91, %p92
      %s94 = ssub.s32 %s34, %s41
      %p95 = scmp.eq.s32.totalorder %s94, 0
      %s97 = sadd.s32 %s96, 1
      %s98 = scalar_select %p95, %s96, %s97
      %p101 = pneg %p95
      %p102 = scmp.eq.s32.totalorder %s34, 1
      %p103 = por %p101, %p102
      %p104 = scmp.ne.s32.totalorder %s96, %s99
      %p105 = scmp.eq.s32.totalorder %s34, 0
      %p106 = por %p104, %p105
      %p107 = scmp.ne.s32.totalorder %s96, %s99
      %p108 = scmp.eq.s32.totalorder %s39, 1
      %p109 = por %p107, %p108
      %p110 = scmp.ne.s32.totalorder %s99, %s100
      %p111 = scmp.eq.s32.totalorder %s39, 0
      %p112 = por %p110, %p111
      %p113 = scmp.ne.s32.totalorder %s99, %s100
      %p114 = scmp.eq.s32.totalorder %s40, 1
      %p115 = por %p113, %p114
      %p117 = scmp.ne.s32.totalorder %s100, %s116
      %p118 = scmp.eq.s32.totalorder %s40, 0
      %p119 = por %p117, %p118
      %s120 = ssub.s32 %s34, %s41
      %p121 = scmp.eq.s32.totalorder %s120, 0
      %s123 = sadd.s32 %s122, 1
      %s124 = scalar_select %p121, %s122, %s123
      %p127 = pneg %p121
      %p128 = scmp.eq.s32.totalorder %s34, 1
      %p129 = por %p127, %p128
      %p130 = scmp.ne.s32.totalorder %s122, %s125
      %p131 = scmp.eq.s32.totalorder %s34, 0
      %p132 = por %p130, %p131
      %p133 = scmp.ne.s32.totalorder %s122, %s125
      %p134 = scmp.eq.s32.totalorder %s39, 1
      %p135 = por %p133, %p134
      %p136 = scmp.ne.s32.totalorder %s125, %s126
      %p137 = scmp.eq.s32.totalorder %s39, 0
      %p138 = por %p136, %p137
      %p139 = scmp.ne.s32.totalorder %s125, %s126
      %p140 = scmp.eq.s32.totalorder %s40, 1
      %p141 = por %p139, %p140
      %p143 = scmp.ne.s32.totalorder %s126, %s142
      %p144 = scmp.eq.s32.totalorder %s40, 0
      %p145 = por %p143, %p144
      %s147 = sadd.s32 %s146, 1
      %p150 = scmp.eq.s32.totalorder %s34, 1
      %p151 = scmp.ne.s32.totalorder %s146, %s148
      %p152 = scmp.eq.s32.totalorder %s34, 0
      %p153 = por %p151, %p152
      %p154 = scmp.ne.s32.totalorder %s146, %s148
      %p155 = scmp.eq.s32.totalorder %s39, 1
      %p156 = por %p154, %p155
      %p157 = scmp.ne.s32.totalorder %s148, %s149
      %p158 = scmp.eq.s32.totalorder %s39, 0
      %p159 = por %p157, %p158
      %p160 = scmp.ne.s32.totalorder %s148, %s149
      %p161 = scmp.eq.s32.totalorder %s40, 1
      %p162 = por %p160, %p161
      %p164 = scmp.ne.s32.totalorder %s149, %s163
      %p165 = scmp.eq.s32.totalorder %s40, 0
      %p166 = por %p164, %p165
      %s168 = sadd.s32 %s167, 1
      %p171 = scmp.eq.s32.totalorder %s34, 1
      %p172 = scmp.ne.s32.totalorder %s167, %s169
      %p173 = scmp.eq.s32.totalorder %s34, 0
      %p174 = por %p172, %p173
      %p175 = scmp.ne.s32.totalorder %s167, %s169
      %p176 = scmp.eq.s32.totalorder %s39, 1
      %p177 = por %p175, %p176
      %p178 = scmp.ne.s32.totalorder %s169, %s170
      %p179 = scmp.eq.s32.totalorder %s39, 0
      %p180 = por %p178, %p179
      %p181 = scmp.ne.s32.totalorder %s169, %s170
      %p182 = scmp.eq.s32.totalorder %s40, 1
      %p183 = por %p181, %p182
      %p185 = scmp.ne.s32.totalorder %s170, %s184
      %p186 = scmp.eq.s32.totalorder %s40, 0
      %p187 = por %p185, %p186
      %s189 = sadd.s32 %s188, 1
      %p192 = scmp.eq.s32.totalorder %s34, 1
      %p193 = scmp.ne.s32.totalorder %s188, %s190
      %p194 = scmp.eq.s32.totalorder %s34, 0
      %p195 = por %p193, %p194
      %p196 = scmp.ne.s32.totalorder %s188, %s190
      %p197 = scmp.eq.s32.totalorder %s39, 1
      %p198 = por %p196, %p197
      %p199 = scmp.ne.s32.totalorder %s190, %s191
      %p200 = scmp.eq.s32.totalorder %s39, 0
      %p201 = por %p199, %p200
      %p202 = scmp.ne.s32.totalorder %s190, %s191
      %p203 = scmp.eq.s32.totalorder %s40, 1
      %p204 = por %p202, %p203
      %p206 = scmp.ne.s32.totalorder %s191, %s205
      %p207 = scmp.eq.s32.totalorder %s40, 0
      %p208 = por %p206, %p207
      %s210 = sadd.s32 %s209, 1
      %p213 = scmp.eq.s32.totalorder %s34, 1
      %p214 = scmp.ne.s32.totalorder %s209, %s211
      %p215 = scmp.eq.s32.totalorder %s34, 0
      %p216 = por %p214, %p215
      %p217 = scmp.ne.s32.totalorder %s209, %s211
      %p218 = scmp.eq.s32.totalorder %s39, 1
      %p219 = por %p217, %p218
      %p220 = scmp.ne.s32.totalorder %s211, %s212
      %p221 = scmp.eq.s32.totalorder %s39, 0
      %p222 = por %p220, %p221
      %p223 = scmp.ne.s32.totalorder %s211, %s212
      %p224 = scmp.eq.s32.totalorder %s40, 1
      %p225 = por %p223, %p224
      %p227 = scmp.ne.s32.totalorder %s212, %s226
      %p228 = scmp.eq.s32.totalorder %s40, 0
      %p229 = por %p227, %p228
      %s231 = sadd.s32 %s230, 1
      %p234 = scmp.eq.s32.totalorder %s34, 1
      %p235 = scmp.ne.s32.totalorder %s230, %s232
      %p236 = scmp.eq.s32.totalorder %s34, 0
      %p237 = por %p235, %p236
      %p238 = scmp.ne.s32.totalorder %s230, %s232
      %p239 = scmp.eq.s32.totalorder %s39, 1
      %p240 = por %p238, %p239
      %p241 = scmp.ne.s32.totalorder %s232, %s233
      %p242 = scmp.eq.s32.totalorder %s39, 0
      %p243 = por %p241, %p242
      %p244 = scmp.ne.s32.totalorder %s232, %s233
      %p245 = scmp.eq.s32.totalorder %s40, 1
      %p246 = por %p244, %p245
      %p248 = scmp.ne.s32.totalorder %s233, %s247
      %p249 = scmp.eq.s32.totalorder %s40, 0
      %p250 = por %p248, %p249
      %s252 = sadd.s32 %s251, 1
      %p255 = scmp.eq.s32.totalorder %s34, 1
      %p256 = scmp.ne.s32.totalorder %s251, %s253
      %p257 = scmp.eq.s32.totalorder %s34, 0
      %p258 = por %p256, %p257
      %p259 = scmp.ne.s32.totalorder %s251, %s253
      %p260 = scmp.eq.s32.totalorder %s39, 1
      %p261 = por %p259, %p260
      %p262 = scmp.ne.s32.totalorder %s253, %s254
      %p263 = scmp.eq.s32.totalorder %s39, 0
      %p264 = por %p262, %p263
      %p265 = scmp.ne.s32.totalorder %s253, %s254
      %p266 = scmp.eq.s32.totalorder %s40, 1
      %p267 = por %p265, %p266
      %p269 = scmp.ne.s32.totalorder %s254, %s268
      %p270 = scmp.eq.s32.totalorder %s40, 0
      %p271 = por %p269, %p270
      %s273 = sadd.s32 %s272, 1
      %p276 = scmp.eq.s32.totalorder %s34, 1
      %p277 = scmp.ne.s32.totalorder %s272, %s274
      %p278 = scmp.eq.s32.totalorder %s34, 0
      %p279 = por %p277, %p278
      %p280 = scmp.ne.s32.totalorder %s272, %s274
      %p281 = scmp.eq.s32.totalorder %s39, 1
      %p282 = por %p280, %p281
      %p283 = scmp.ne.s32.totalorder %s274, %s275
      %p284 = scmp.eq.s32.totalorder %s39, 0
      %p285 = por %p283, %p284
      %p286 = scmp.ne.s32.totalorder %s274, %s275
      %p287 = scmp.eq.s32.totalorder %s40, 1
      %p288 = por %p286, %p287
      %p290 = scmp.ne.s32.totalorder %s275, %s289
      %p291 = scmp.eq.s32.totalorder %s40, 0
      %p292 = por %p290, %p291
      %s294 = sadd.s32 %s293, 1
      %p297 = scmp.eq.s32.totalorder %s34, 1
      %p298 = scmp.ne.s32.totalorder %s293, %s295
      %p299 = scmp.eq.s32.totalorder %s34, 0
      %p300 = por %p298, %p299
      %p301 = scmp.ne.s32.totalorder %s293, %s295
      %p302 = scmp.eq.s32.totalorder %s39, 1
      %p303 = por %p301, %p302
      %p304 = scmp.ne.s32.totalorder %s295, %s296
      %p305 = scmp.eq.s32.totalorder %s39, 0
      %p306 = por %p304, %p305
      %p307 = scmp.ne.s32.totalorder %s295, %s296
      %p308 = scmp.eq.s32.totalorder %s40, 1
      %p309 = por %p307, %p308
      %p311 = scmp.ne.s32.totalorder %s296, %s310
      %p312 = scmp.eq.s32.totalorder %s40, 0
      %p313 = por %p311, %p312
      %s314 = ssub.s32 %s34, %s41
      %p315 = scmp.eq.s32.totalorder %s314, 0
      %s317 = sadd.s32 %s316, 1
      %s318 = scalar_select %p315, %s316, %s317
      %p321 = pneg %p315
      %p322 = scmp.eq.s32.totalorder %s34, 1
      %p323 = por %p321, %p322
      %p324 = scmp.ne.s32.totalorder %s316, %s319
      %p325 = scmp.eq.s32.totalorder %s34, 0
      %p326 = por %p324, %p325
      %p327 = scmp.ne.s32.totalorder %s316, %s319
      %p328 = scmp.eq.s32.totalorder %s39, 1
      %p329 = por %p327, %p328
      %p330 = scmp.ne.s32.totalorder %s319, %s320
      %p331 = scmp.eq.s32.totalorder %s39, 0
      %p332 = por %p330, %p331
      %p333 = scmp.ne.s32.totalorder %s319, %s320
      %p334 = scmp.eq.s32.totalorder %s40, 1
      %p335 = por %p333, %p334
      %p337 = scmp.ne.s32.totalorder %s320, %s336
      %p338 = scmp.eq.s32.totalorder %s40, 0
      %p339 = por %p337, %p338
      %s340 = ssub.s32 %s34, %s41
      %p341 = scmp.eq.s32.totalorder %s340, 0
      %s343 = sadd.s32 %s342, 1
      %s344 = scalar_select %p341, %s342, %s343
      %p347 = pneg %p341
      %p348 = scmp.eq.s32.totalorder %s34, 1
      %p349 = por %p347, %p348
      %p350 = scmp.ne.s32.totalorder %s342, %s345
      %p351 = scmp.eq.s32.totalorder %s34, 0
      %p352 = por %p350, %p351
      %p353 = scmp.ne.s32.totalorder %s342, %s345
      %p354 = scmp.eq.s32.totalorder %s39, 1
      %p355 = por %p353, %p354
      %p356 = scmp.ne.s32.totalorder %s345, %s346
      %p357 = scmp.eq.s32.totalorder %s39, 0
      %p358 = por %p356, %p357
      %p359 = scmp.ne.s32.totalorder %s345, %s346
      %p360 = scmp.eq.s32.totalorder %s40, 1
      %p361 = por %p359, %p360
      %p363 = scmp.ne.s32.totalorder %s346, %s362
      %p364 = scmp.eq.s32.totalorder %s40, 0
      %p365 = por %p363, %p364
      %p366 = scmp.le.s32.totalorder 1, %s34
      %p367 = scmp.lt.s32.totalorder %s34, 3
      %p368 = pnand %p366, %p367
      %p369 = pneg %p368
      // Predicated region
      $region9: #{tpu_custom_call.1} parent=5 // pred_check
        _
      $region10: #{tpu_custom_call.1} parent=5 // pred_check_branch
        %371 = sbr.rel (%p368) target = $region12
      $region11: #{tpu_custom_call.1} parent=5 // pred_region
        %s372 = ssub.s32 %s34, 1
        // Predicated region
        $region13: #{tpu_custom_call.1} parent=11 // pred_check
          %p373 = pneg %p159
        $region14: #{tpu_custom_call.1} parent=11 // pred_check_branch
          %375 = sbr.rel (%p373) target = $region16
        $region15: #{tpu_custom_call.1} parent=11 // pred_region
          %377 = vsyncadd [#allocation9], 0
          %s378 = sshll.u32 %s4, 4
          %s379 = int_to_ptr.hbm [resolvable:$true] %s378
          %s380 = sshll.u32 [#allocation8], 4
          %s381 = int_to_ptr.vmem [resolvable:$true] %s380
          %386 = dma.hbm_to_vmem [thread:$0]  %s379, 256, %s381, [#allocation9], 64, 64, 4
        $region16: #{tpu_custom_call.1} parent=11 // pred_fallthru
          _
        // Predicated region
        $region17: #{tpu_custom_call.1} parent=11 // pred_check
          %p387 = pneg %p180
        $region18: #{tpu_custom_call.1} parent=11 // pred_check_branch
          %389 = sbr.rel (%p387) target = $region20
        $region19: #{tpu_custom_call.1} parent=11 // pred_region
          _
        $region20: #{tpu_custom_call.1} parent=11 // pred_fallthru
          _
        // Predicated region
        $region21: #{tpu_custom_call.1} parent=11 // pred_check
          %p390 = pneg %p201
        $region22: #{tpu_custom_call.1} parent=11 // pred_check_branch
          %392 = sbr.rel (%p390) target = $region24
        $region23: #{tpu_custom_call.1} parent=11 // pred_region
          %394 = vsyncadd [#allocation9], 0
          %s395 = sshll.u32 %s6, 4
          %s396 = int_to_ptr.hbm [resolvable:$true] %s395
          %s397 = sshll.u32 [#allocation10], 4
          %s398 = int_to_ptr.vmem [resolvable:$true] %s397
          %403 = dma.hbm_to_vmem [thread:$0]  %s396, 256, %s398, [#allocation9], 64, 64, 4
        $region24: #{tpu_custom_call.1} parent=11 // pred_fallthru
          _
        // Predicated region
        $region25: #{tpu_custom_call.1} parent=11 // pred_check
          %p404 = pneg %p222
        $region26: #{tpu_custom_call.1} parent=11 // pred_check_branch
          %406 = sbr.rel (%p404) target = $region28
        $region27: #{tpu_custom_call.1} parent=11 // pred_region
          _
        $region28: #{tpu_custom_call.1} parent=11 // pred_fallthru
          _
        // Predicated region
        $region29: #{tpu_custom_call.1} parent=11 // pred_check
          %p407 = pneg %p243
        $region30: #{tpu_custom_call.1} parent=11 // pred_check_branch
          %409 = sbr.rel (%p407) target = $region32
        $region31: #{tpu_custom_call.1} parent=11 // pred_region
          %411 = vsyncadd [#allocation12], 0
          %s412 = sshll.u32 %s8, 4
          %s413 = int_to_ptr.hbm [resolvable:$true] %s412
          %s414 = sshll.u32 [#allocation11], 4
          %s415 = int_to_ptr.vmem [resolvable:$true] %s414
          %420 = dma.hbm_to_vmem [thread:$0]  %s413, 256, %s415, [#allocation12], 64, 64, 4
        $region32: #{tpu_custom_call.1} parent=11 // pred_fallthru
          _
        // Predicated region
        $region33: #{tpu_custom_call.1} parent=11 // pred_check
          %p421 = pneg %p264
        $region34: #{tpu_custom_call.1} parent=11 // pred_check_branch
          %423 = sbr.rel (%p421) target = $region36
        $region35: #{tpu_custom_call.1} parent=11 // pred_region
          _
        $region36: #{tpu_custom_call.1} parent=11 // pred_fallthru
          _
        // Predicated region
        $region37: #{tpu_custom_call.1} parent=11 // pred_check
          %p424 = pneg %p285
        $region38: #{tpu_custom_call.1} parent=11 // pred_check_branch
          %426 = sbr.rel (%p424) target = $region40
        $region39: #{tpu_custom_call.1} parent=11 // pred_region
          %428 = vsyncadd [#allocation12], 0
          %s429 = sshll.u32 %s10, 4
          %s430 = int_to_ptr.hbm [resolvable:$true] %s429
          %s431 = sshll.u32 [#allocation13], 4
          %s432 = int_to_ptr.vmem [resolvable:$true] %s431
          %437 = dma.hbm_to_vmem [thread:$0]  %s430, 256, %s432, [#allocation12], 64, 64, 4
        $region40: #{tpu_custom_call.1} parent=11 // pred_fallthru
          _
        // Predicated region
        $region41: #{tpu_custom_call.1} parent=11 // pred_check
          %p438 = pneg %p306
        $region42: #{tpu_custom_call.1} parent=11 // pred_check_branch
          %440 = sbr.rel (%p438) target = $region44
        $region43: #{tpu_custom_call.1} parent=11 // pred_region
          _
        $region44: #{tpu_custom_call.1} parent=11 // pred_fallthru
          _
      $region12: #{tpu_custom_call.1} parent=5 // pred_fallthru
        _
      %p441 = scmp.lt.s32.totalorder %s34, 2
      // Predicated region
      $region45: #{tpu_custom_call.1} parent=5 // pred_check
        %p442 = pneg %p441
      $region46: #{tpu_custom_call.1} parent=5 // pred_check_branch
        %444 = sbr.rel (%p442) target = $region48
      $region47: #{tpu_custom_call.1} parent=5 // pred_region
        // Predicated region
        $region49: #{tpu_custom_call.1} parent=47 // pred_check
          %p445 = pneg %p54
        $region50: #{tpu_custom_call.1} parent=47 // pred_check_branch
          %447 = sbr.rel (%p445) target = $region52
        $region51: #{tpu_custom_call.1} parent=47 // pred_region
          %s448 = sand.u32 %s44, 1
          %s449 = scalar_lea.sflag [#allocation3], %s448
          %s450 = sand.u32 %s44, 1
          %s451 = smul.addr %s450, 8
          %s452 = scalar_lea.vmem [#allocation2], %s451
          %454 = vsyncadd %s449, 0
          %s455 = smul.addr %s34, 8
          %s456 = scalar_lea.hbm %s0, %s455
          %s458 = sshll.u32 %s456, 4
          %s459 = int_to_ptr.hbm [resolvable:$true] %s458
          %s460 = sshll.u32 %s452, 4
          %s461 = int_to_ptr.vmem [resolvable:$true] %s460
          %463 = dma.hbm_to_vmem [thread:$0]  %s459, 128, %s461, %s449
        $region52: #{tpu_custom_call.1} parent=47 // pred_fallthru
          _
        // Predicated region
        $region53: #{tpu_custom_call.1} parent=47 // pred_check
          %p464 = pneg %p80
        $region54: #{tpu_custom_call.1} parent=47 // pred_check_branch
          %466 = sbr.rel (%p464) target = $region56
        $region55: #{tpu_custom_call.1} parent=47 // pred_region
          %s467 = sand.u32 %s34, 1
          %s468 = scalar_lea.sflag [#allocation6], %s467
          %s469 = sand.u32 %s70, 1
          %s470 = smul.addr %s469, 8
          %s471 = scalar_lea.vmem [#allocation5], %s470
          %473 = vsyncadd %s468, 0
          %s474 = smul.addr %s34, 8
          %s475 = scalar_lea.hbm %s1, %s474
          %s477 = sshll.u32 %s475, 4
          %s478 = int_to_ptr.hbm [resolvable:$true] %s477
          %s479 = sshll.u32 %s471, 4
          %s480 = int_to_ptr.vmem [resolvable:$true] %s479
          %482 = dma.hbm_to_vmem [thread:$0]  %s478, 128, %s480, %s468
        $region56: #{tpu_custom_call.1} parent=47 // pred_fallthru
          _
        // Predicated region
        $region57: #{tpu_custom_call.1} parent=47 // pred_check
          %p483 = pneg %p106
        $region58: #{tpu_custom_call.1} parent=47 // pred_check_branch
          %485 = sbr.rel (%p483) target = $region60
        $region59: #{tpu_custom_call.1} parent=47 // pred_region
          %s486 = sand.u32 %s34, 1
          %s487 = scalar_lea.sflag [#allocation6], %s486
          %s488 = sand.u32 %s96, 1
          %s489 = smul.addr %s488, 8
          %s490 = scalar_lea.vmem [#allocation7], %s489
          %492 = vsyncadd %s487, 0
          %s493 = smul.addr %s34, 8
          %s494 = scalar_lea.hbm %s2, %s493
          %s496 = sshll.u32 %s494, 4
          %s497 = int_to_ptr.hbm [resolvable:$true] %s496
          %s498 = sshll.u32 %s490, 4
          %s499 = int_to_ptr.vmem [resolvable:$true] %s498
          %501 = dma.hbm_to_vmem [thread:$0]  %s497, 128, %s499, %s487
        $region60: #{tpu_custom_call.1} parent=47 // pred_fallthru
          _
        // Predicated region
        $region61: #{tpu_custom_call.1} parent=47 // pred_check
          %p502 = pneg %p132
        $region62: #{tpu_custom_call.1} parent=47 // pred_check_branch
          %504 = sbr.rel (%p502) target = $region64
        $region63: #{tpu_custom_call.1} parent=47 // pred_region
          %p505 = scmp.lt.s32.totalorder %s34, 1
          %s506 = scalar_select %p505, %s34, 1
          %s507 = scalar_lea.vmem %s3, %s506
        $region64: #{tpu_custom_call.1} parent=47 // pred_fallthru
          _
      $region48: #{tpu_custom_call.1} parent=5 // pred_fallthru
        _
      %p508 = scmp.le.s32.totalorder 1, %s34
      %p509 = scmp.lt.s32.totalorder %s34, 3
      %p510 = pnand %p508, %p509
      %p511 = pneg %p510
      // Predicated region
      $region65: #{tpu_custom_call.1} parent=5 // pred_check
        _
      $region66: #{tpu_custom_call.1} parent=5 // pred_check_branch
        %513 = sbr.rel (%p510) target = $region68
      $region67: #{tpu_custom_call.1} parent=5 // pred_region
        %s514 = ssub.s32 %s34, 1
        %s515 = sand.u32 %s47, 1
        %s516 = scalar_lea.sflag [#allocation3], %s515
        %s517 = sand.u32 %s47, 1
        %s518 = smul.addr %s517, 8
        %s519 = scalar_lea.vmem [#allocation2], %s518
        // Predicated region
        $region69: #{tpu_custom_call.1} parent=67 // pred_check
          %p520 = pneg %p60
        $region70: #{tpu_custom_call.1} parent=67 // pred_check_branch
          %522 = sbr.rel (%p520) target = $region72
        $region71: #{tpu_custom_call.1} parent=67 // pred_region
          %524 = dma.done %s516, 128
        $region72: #{tpu_custom_call.1} parent=67 // pred_fallthru
          _
        %s525 = sand.u32 %s39, 1
        %s526 = scalar_lea.sflag [#allocation6], %s525
        %s527 = sand.u32 %s73, 1
        %s528 = smul.addr %s527, 8
        %s529 = scalar_lea.vmem [#allocation5], %s528
        // Predicated region
        $region73: #{tpu_custom_call.1} parent=67 // pred_check
          %p530 = pneg %p86
        $region74: #{tpu_custom_call.1} parent=67 // pred_check_branch
          %532 = sbr.rel (%p530) target = $region76
        $region75: #{tpu_custom_call.1} parent=67 // pred_region
          %534 = dma.done %s526, 128
        $region76: #{tpu_custom_call.1} parent=67 // pred_fallthru
          _
        %s535 = sand.u32 %s39, 1
        %s536 = scalar_lea.sflag [#allocation6], %s535
        %s537 = sand.u32 %s99, 1
        %s538 = smul.addr %s537, 8
        %s539 = scalar_lea.vmem [#allocation7], %s538
        // Predicated region
        $region77: #{tpu_custom_call.1} parent=67 // pred_check
          %p540 = pneg %p112
        $region78: #{tpu_custom_call.1} parent=67 // pred_check_branch
          %542 = sbr.rel (%p540) target = $region80
        $region79: #{tpu_custom_call.1} parent=67 // pred_region
          %544 = dma.done %s536, 128
        $region80: #{tpu_custom_call.1} parent=67 // pred_fallthru
          _
        // Predicated region
        $region81: #{tpu_custom_call.1} parent=67 // pred_check
          %p545 = pneg %p159
        $region82: #{tpu_custom_call.1} parent=67 // pred_check_branch
          %547 = sbr.rel (%p545) target = $region84
        $region83: #{tpu_custom_call.1} parent=67 // pred_region
          %549 = dma.done [#allocation9], 256
        $region84: #{tpu_custom_call.1} parent=67 // pred_fallthru
          _
        // Predicated region
        $region85: #{tpu_custom_call.1} parent=67 // pred_check
          %p550 = pneg %p201
        $region86: #{tpu_custom_call.1} parent=67 // pred_check_branch
          %552 = sbr.rel (%p550) target = $region88
        $region87: #{tpu_custom_call.1} parent=67 // pred_region
          %554 = dma.done [#allocation9], 256
        $region88: #{tpu_custom_call.1} parent=67 // pred_fallthru
          _
        // Predicated region
        $region89: #{tpu_custom_call.1} parent=67 // pred_check
          %p555 = pneg %p243
        $region90: #{tpu_custom_call.1} parent=67 // pred_check_branch
          %557 = sbr.rel (%p555) target = $region92
        $region91: #{tpu_custom_call.1} parent=67 // pred_region
          %559 = dma.done [#allocation12], 256
        $region92: #{tpu_custom_call.1} parent=67 // pred_fallthru
          _
        // Predicated region
        $region93: #{tpu_custom_call.1} parent=67 // pred_check
          %p560 = pneg %p285
        $region94: #{tpu_custom_call.1} parent=67 // pred_check_branch
          %562 = sbr.rel (%p560) target = $region96
        $region95: #{tpu_custom_call.1} parent=67 // pred_region
          %564 = dma.done [#allocation12], 256
        $region96: #{tpu_custom_call.1} parent=67 // pred_fallthru
          _
        %s565 = sand.u32 %s47, 1
        %s566 = scalar_lea.sflag [#allocation3], %s565
        %s567 = sand.u32 %s47, 1
        %s568 = smul.addr %s567, 8
        %s569 = scalar_lea.vmem [#allocation2], %s568
        %p570 = pneg %p60
        %p571 = pneg %p57
        %s572 = sand.u32 %s39, 1
        %s573 = scalar_lea.sflag [#allocation6], %s572
        %s574 = sand.u32 %s73, 1
        %s575 = smul.addr %s574, 8
        %s576 = scalar_lea.vmem [#allocation5], %s575
        %p577 = pneg %p86
        %p578 = pneg %p83
        %s579 = sand.u32 %s39, 1
        %s580 = scalar_lea.sflag [#allocation6], %s579
        %s581 = sand.u32 %s99, 1
        %s582 = smul.addr %s581, 8
        %s583 = scalar_lea.vmem [#allocation7], %s582
        %p584 = pneg %p112
        %p585 = pneg %p109
        %p586 = scmp.lt.s32.totalorder %s39, 1
        %s587 = scalar_select %p586, %s39, 1
        %s588 = scalar_lea.vmem %s3, %s587
        %p589 = pneg %p138
        %p590 = pneg %p135
        %p591 = pneg %p159
        %p592 = pneg %p156
        %p593 = pneg %p180
        %p594 = pneg %p177
        %p595 = pneg %p201
        %p596 = pneg %p198
        %p597 = pneg %p222
        %p598 = pneg %p219
        %p599 = pneg %p243
        %p600 = pneg %p240
        %p601 = pneg %p264
        %p602 = pneg %p261
        %p603 = pneg %p285
        %p604 = pneg %p282
        %p605 = pneg %p306
        %p606 = pneg %p303
        %p607 = pneg %p332
        %p608 = pneg %p329
        %s609 = sand.u32 %s319, 1
        %s610 = scalar_lea.sflag [#allocation4], %s609
        %s611 = sand.u32 %s319, 1
        %s612 = smul.addr %s611, 8
        %s613 = scalar_lea.vmem [#allocation14], %s612
        %p614 = pneg %p358
        %p615 = pneg %p355
        %s616 = sand.u32 %s345, 1
        %s617 = scalar_lea.sflag [#allocation16], %s616
        %s618 = sand.u32 %s345, 1
        %s619 = smul.addr %s618, 4
        %s620 = scalar_lea.vmem [#allocation15], %s619
        %p621 = scmp.lt.s32.totalorder %s39, 1
        %s622 = scalar_select %p621, %s39, 1
        %s623 = scalar_lea.vmem %s3, %s622
        %v625 = vld [vmem:[%s519] sm:$0xff]
        %v626 = vpack.c.bf16 %v625, %v625
        %v627 = vld [vmem:[%s529] sm:$0xff]
        %v628 = vpack.c.bf16 %v627, %v627
        %v629 = vld [vmem:[%s539] sm:$0xff]
        %v630 = vpack.c.bf16 %v629, %v629
        %v631 = vld [vmem:[#allocation8] sm:$0xf]
        %v632 = vld [vmem:[#allocation8 + $0x4] sm:$0xf]
        %v633 = vld [vmem:[#allocation8 + $0x8] sm:$0xf]
        %v634 = vld [vmem:[#allocation8 + $0xc] sm:$0xf]
        %v635 = vld [vmem:[%s5] sm:$0x1]
        %v637 = vperm.slane %v635, 0
        %v643 = vunpack.c.l.b16 %v631
        %v644 = vunpack.c.l.b16 %v632
        %v645 = vunpack.c.l.b16 %v633
        %v646 = vunpack.c.l.b16 %v634
        %v647 = vpack.c.b16 %v644, %v643
        %v648 = vpack.c.b16 %v646, %v645
        %vm651 = vcmask 261120
        %v653 = vsel %vm651, %v626, 0
        %655 = vmatpush.bf16.msra.mxu0 0
        %656 = vmatpush.bf16.msra.mxu0 0
        %657 = vmatpush.bf16.msra.mxu0 0
        %658 = vmatpush.bf16.msra.mxu0 0
        %659 = vmatpush.bf16.msra.mxu0 0
        %660 = vmatpush.bf16.msra.mxu0 0
        %661 = vmatpush.bf16.msra.mxu0 %v648
        %662 = vmatpush.bf16.msra.mxu0 %v647
        %663 = vmatmul.bf16.gmra.mxu0 %v653
        %v664 = vpop.f32.mrf.mxu0
        %v665 = vadd.f32 %v637, %v664
        %v666 = vpop.f32.mrf.mxu0
        %667 = vdwg.mxu0
        %v668 = vld [vmem:[#allocation10] sm:$0xf]
        %v669 = vld [vmem:[#allocation10 + $0x4] sm:$0xf]
        %v670 = vld [vmem:[#allocation10 + $0x8] sm:$0xf]
        %v671 = vld [vmem:[#allocation10 + $0xc] sm:$0xf]
        %v672 = vld [vmem:[%s7] sm:$0x1]
        %v674 = vperm.slane %v672, 0
        %v680 = vunpack.c.l.b16 %v668
        %v681 = vunpack.c.l.b16 %v669
        %v682 = vunpack.c.l.b16 %v670
        %v683 = vunpack.c.l.b16 %v671
        %v684 = vpack.c.b16 %v681, %v680
        %v685 = vpack.c.b16 %v683, %v682
        %v689 = vsel %vm651, %v628, 0
        %691 = vmatpush.bf16.msra.mxu0 0
        %692 = vmatpush.bf16.msra.mxu0 0
        %693 = vmatpush.bf16.msra.mxu0 0
        %694 = vmatpush.bf16.msra.mxu0 0
        %695 = vmatpush.bf16.msra.mxu0 0
        %696 = vmatpush.bf16.msra.mxu0 0
        %697 = vmatpush.bf16.msra.mxu0 %v685
        %698 = vmatpush.bf16.msra.mxu0 %v684
        %699 = vmatmul.bf16.gmra.mxu0 %v689
        %v700 = vpop.f32.mrf.mxu0
        %v701 = vadd.f32 %v674, %v700
        %v702 = vpop.f32.mrf.mxu0
        %703 = vdwg.mxu0
        %v704 = vld [vmem:[#allocation11] sm:$0xf]
        %v705 = vld [vmem:[#allocation11 + $0x4] sm:$0xf]
        %v706 = vld [vmem:[#allocation11 + $0x8] sm:$0xf]
        %v707 = vld [vmem:[#allocation11 + $0xc] sm:$0xf]
        %v708 = vld [vmem:[%s9] sm:$0x1]
        %v710 = vperm.slane %v708, 0
        %v716 = vunpack.c.l.b16 %v704
        %v717 = vunpack.c.l.b16 %v705
        %v718 = vunpack.c.l.b16 %v706
        %v719 = vunpack.c.l.b16 %v707
        %v720 = vpack.c.b16 %v717, %v716
        %v721 = vpack.c.b16 %v719, %v718
        %v725 = vsel %vm651, %v630, 0
        %727 = vmatpush.bf16.msra.mxu0 0
        %728 = vmatpush.bf16.msra.mxu0 0
        %729 = vmatpush.bf16.msra.mxu0 0
        %730 = vmatpush.bf16.msra.mxu0 0
        %731 = vmatpush.bf16.msra.mxu0 0
        %732 = vmatpush.bf16.msra.mxu0 0
        %733 = vmatpush.bf16.msra.mxu0 %v721
        %734 = vmatpush.bf16.msra.mxu0 %v720
        %735 = vmatmul.bf16.gmra.mxu0 %v725
        %v736 = vpop.f32.mrf.mxu0
        %v737 = vadd.f32 %v710, %v736
        %v738 = vpop.f32.mrf.mxu0
        %739 = vdwg.mxu0
        %v740 = vpack.c.bf16 %v665, %v665
        %v741 = vpack.c.bf16 %v701, %v701
        %v742 = vpack.c.bf16 %v737, %v737
        %v743 = vld [vmem:[%s623] sm:$0x1]
        %v745 = vperm.slane %v743, 0
        %v748 = vsel %vm651, %v740, 0
        %v751 = vsel %vm651, %v741, 0
        %753 = vmatpush.bf16.xpose.msra.mxu0 0
        %754 = vmatpush.bf16.xpose.msra.mxu0 0
        %755 = vmatpush.bf16.xpose.msra.mxu0 0
        %756 = vmatpush.bf16.xpose.msra.mxu0 0
        %757 = vmatpush.bf16.xpose.msra.mxu0 0
        %758 = vmatpush.bf16.xpose.msra.mxu0 0
        %759 = vmatpush.bf16.xpose.msra.mxu0 0
        %760 = vmatpush.bf16.xpose.msra.mxu0 %v751
        %761 = vmatmul.bf16.gmra.mxu0 %v748
        %v762 = vpop.f32.mrf.mxu0
        %v763 = vadd.f32 %v745, %v762
        %v764 = vpop.f32.mrf.mxu0
        %765 = vdwg.mxu0
        %vm766 = vcmask 64512
        %v767 = vsel %vm766, %v763, -inf
        %768 = vmax.xlane.f32.xlu0 %v767
        %v769 = vpop.xlane.xlu0 %768
        %v770 = vsub.f32 %v763, %v769
        %v771 = vmul.f32 %v770, 1.442695
        %v772 = vpow.pop %v771
        %v773 = vsel %vm766, %v772, 0.0
        %774 = vadd.xlane.f32.xlu0 %v773
        %v775 = vpop.xlane.xlu0 %774
        %v776 = vrcp.pop %v775
        %v777 = vmul.f32 %v775, %v776
        %v778 = vsub.f32 2.0, %v777
        %v779 = vmul.f32 %v776, %v778
        %v780 = vmul.f32 %v772, %v779
        %v781 = vpack.c.bf16 %v780, %v780
        %v783 = vsel %vm766, %v781, 0
        %vm785 = vcmask 1043456
        %v787 = vsel %vm785, %v742, 0
        %789 = vmatpush.bf16.msra.mxu0 0
        %790 = vmatpush.bf16.msra.mxu0 0
        %791 = vmatpush.bf16.msra.mxu0 0
        %792 = vmatpush.bf16.msra.mxu0 0
        %793 = vmatpush.bf16.msra.mxu0 0
        %794 = vmatpush.bf16.msra.mxu0 0
        %795 = vmatpush.bf16.msra.mxu0 0
        %796 = vmatpush.bf16.msra.mxu0 %v787
        %797 = vmatmul.bf16.gmra.mxu0 %v783
        %v798 = vpop.f32.mrf.mxu0
        %v799 = vadd.f32 0.0, %v798
        %v800 = vpop.f32.mrf.mxu0
        %801 = vdwg.mxu0
        %v802 = vpack.c.bf16 %v799, %v799
        %v803 = vld [vmem:[#allocation13] sm:$0xf]
        %v804 = vld [vmem:[#allocation13 + $0x4] sm:$0xf]
        %v805 = vld [vmem:[#allocation13 + $0x8] sm:$0xf]
        %v806 = vld [vmem:[#allocation13 + $0xc] sm:$0xf]
        %v807 = vld [vmem:[%s11] sm:$0x1]
        %v809 = vperm.slane %v807, 0
        %v815 = vunpack.c.l.b16 %v803
        %v816 = vunpack.c.l.b16 %v804
        %v817 = vunpack.c.l.b16 %v805
        %v818 = vunpack.c.l.b16 %v806
        %v819 = vpack.c.b16 %v816, %v815
        %v820 = vpack.c.b16 %v818, %v817
        %v824 = vsel %vm651, %v802, 0
        %826 = vmatpush.bf16.msra.mxu0 0
        %827 = vmatpush.bf16.msra.mxu0 0
        %828 = vmatpush.bf16.msra.mxu0 0
        %829 = vmatpush.bf16.msra.mxu0 0
        %830 = vmatpush.bf16.msra.mxu0 0
        %831 = vmatpush.bf16.msra.mxu0 0
        %832 = vmatpush.bf16.msra.mxu0 %v820
        %833 = vmatpush.bf16.msra.mxu0 %v819
        %834 = vmatmul.bf16.gmra.mxu0 %v824
        %v835 = vpop.f32.mrf.mxu0
        %v836 = vadd.f32 %v809, %v835
        %v837 = vpop.f32.mrf.mxu0
        %838 = vdwg.mxu0
        %839 = vst.msk [vmem:[%s613] sm:$0xff] %vm651, %v836
        %vm840 = vcmask 60416
        %841 = vst.msk [vmem:[%s620] sm:$0xf] %vm840, %v781
        %s842 = sand.u32 %s319, 1
        %s843 = scalar_lea.sflag [#allocation4], %s842
        %s844 = sand.u32 %s319, 1
        %s845 = smul.addr %s844, 8
        %s846 = scalar_lea.vmem [#allocation14], %s845
        %s847 = sand.u32 %s345, 1
        %s848 = scalar_lea.sflag [#allocation16], %s847
        %s849 = sand.u32 %s345, 1
        %s850 = smul.addr %s849, 4
        %s851 = scalar_lea.vmem [#allocation15], %s850
        // Predicated region
        $region97: #{tpu_custom_call.1} parent=67 // pred_check
          %p852 = pneg %p329
        $region98: #{tpu_custom_call.1} parent=67 // pred_check_branch
          %854 = sbr.rel (%p852) target = $region100
        $region99: #{tpu_custom_call.1} parent=67 // pred_region
          %856 = vsyncadd %s843, 0
          %s857 = smul.addr %s39, 8
          %s858 = scalar_lea.hbm %s12, %s857
          %s860 = sshll.u32 %s846, 4
          %s861 = int_to_ptr.vmem [resolvable:$true] %s860
          %s862 = sshll.u32 %s858, 4
          %s863 = int_to_ptr.hbm [resolvable:$true] %s862
          %865 = dma.vmem_to_hbm [thread:$0]  %s861, 128, %s863, %s843
        $region100: #{tpu_custom_call.1} parent=67 // pred_fallthru
          _
        // Predicated region
        $region101: #{tpu_custom_call.1} parent=67 // pred_check
          %p866 = pneg %p355
        $region102: #{tpu_custom_call.1} parent=67 // pred_check_branch
          %868 = sbr.rel (%p866) target = $region104
        $region103: #{tpu_custom_call.1} parent=67 // pred_region
          %870 = vsyncadd %s848, 0
          %s871 = smul.addr %s39, 4
          %s872 = scalar_lea.hbm %s13, %s871
          %s874 = sshll.u32 %s851, 4
          %s875 = int_to_ptr.vmem [resolvable:$true] %s874
          %s876 = sshll.u32 %s872, 4
          %s877 = int_to_ptr.hbm [resolvable:$true] %s876
          %879 = dma.vmem_to_hbm [thread:$0]  %s875, 64, %s877, %s848
        $region104: #{tpu_custom_call.1} parent=67 // pred_fallthru
          _
      $region68: #{tpu_custom_call.1} parent=5 // pred_fallthru
        _
      %p880 = scmp.le.s32.totalorder 2, %s34
      // Predicated region
      $region105: #{tpu_custom_call.1} parent=5 // pred_check
        %p881 = pneg %p880
      $region106: #{tpu_custom_call.1} parent=5 // pred_check_branch
        %883 = sbr.rel (%p881) target = $region108
      $region107: #{tpu_custom_call.1} parent=5 // pred_region
        %s884 = ssub.s32 %s34, 2
        // Predicated region
        $region109: #{tpu_custom_call.1} parent=107 // pred_check
          %p885 = pneg %p335
        $region110: #{tpu_custom_call.1} parent=107 // pred_check_branch
          %887 = sbr.rel (%p885) target = $region112
        $region111: #{tpu_custom_call.1} parent=107 // pred_region
          %s888 = sand.u32 %s320, 1
          %s889 = scalar_lea.sflag [#allocation4], %s888
          %s890 = sand.u32 %s320, 1
          %s891 = smul.addr %s890, 8
          %s892 = scalar_lea.vmem [#allocation14], %s891
          %894 = dma.done %s889, 128
        $region112: #{tpu_custom_call.1} parent=107 // pred_fallthru
          _
        // Predicated region
        $region113: #{tpu_custom_call.1} parent=107 // pred_check
          %p895 = pneg %p361
        $region114: #{tpu_custom_call.1} parent=107 // pred_check_branch
          %897 = sbr.rel (%p895) target = $region116
        $region115: #{tpu_custom_call.1} parent=107 // pred_region
          %s898 = sand.u32 %s346, 1
          %s899 = scalar_lea.sflag [#allocation16], %s898
          %s900 = sand.u32 %s346, 1
          %s901 = smul.addr %s900, 4
          %s902 = scalar_lea.vmem [#allocation15], %s901
          %904 = dma.done %s899, 64
        $region116: #{tpu_custom_call.1} parent=107 // pred_fallthru
          _
      $region108: #{tpu_custom_call.1} parent=5 // pred_fallthru
        _
    $region6: #{tpu_custom_call.1} parent=1 // loop_footer
      %s38 = sadd.s32 1, %s34
    $region7: #{tpu_custom_call.1} parent=1 // loop_footer_branch
      %33 = sbr.rel target = $region3
    $region8: #{tpu_custom_call.1} parent=1 // loop_exit
      _
    %905 = vsyncpa [#allocation3], 1
    %s906 = scalar_lea.sflag [#allocation3], 1
    %907 = vsyncpa %s906, 1
    %908 = vsyncpa [#allocation6], 1
    %s909 = scalar_lea.sflag [#allocation6], 1
    %910 = vsyncpa %s909, 1
    %911 = vsyncpa [#allocation9], 1
    %912 = vsyncpa [#allocation12], 1
    %913 = vsyncpa [#allocation4], 1
    %s914 = scalar_lea.sflag [#allocation4], 1
    %915 = vsyncpa %s914, 1
    %916 = vsyncpa [#allocation16], 1
    %s917 = scalar_lea.sflag [#allocation16], 1
    %918 = vsyncpa %s917, 1

</llo_original>
